<compile_context>
chip_gen: v5e
topology: v5e:2x2
jax: 0.10.0
libtpu: 0.0.40
codegen_flags: <defaults>
</compile_context>

<pallas_src>
import functools

import jax
import jax.numpy as jnp
import numpy as np
from jax.experimental import pallas as pl
from jax.experimental.pallas import tpu as pltpu


def _linear_relu_kernel(x_ref, w_ref, b_ref, o_ref):
    """Fused y = relu(x @ W + b) for one (tm, O) output tile."""
    y = jnp.dot(x_ref[...], w_ref[...], preferred_element_type=jnp.float32)
    o_ref[...] = jnp.maximum(y + b_ref[...], 0.0).astype(o_ref.dtype)


def _round_up(n, m):
    return ((n + m - 1) // m) * m


@functools.partial(jax.jit, static_argnames=("block_m",))
def visual_fc_pallas(x, w_t, b, *, block_m=256):
    """relu(x @ w_t + b) with x:[B,F], w_t:[F,O], b:[1,O] -> [B,O]."""
    B, F = x.shape
    F_w, O = w_t.shape
    assert F == F_w and b.shape == (1, O)

    # Pad F and O to lane-aligned multiples of 128 (zero pad; result unchanged).
    F_pad = _round_up(F, 128)
    O_pad = _round_up(O, 128)
    if F_pad != F:
        x = jnp.pad(x, ((0, 0), (0, F_pad - F)))
        w_t = jnp.pad(w_t, ((0, F_pad - F), (0, 0)))
    if O_pad != O:
        w_t = jnp.pad(w_t, ((0, 0), (0, O_pad - O)))
        b = jnp.pad(b, ((0, 0), (0, O_pad - O)))

    # M tile: whole (8-padded) batch if small, else block_m rows per grid step.
    tm = min(_round_up(B, 8), block_m)
    B_pad = _round_up(B, tm)
    if B_pad != B:
        x = jnp.pad(x, ((0, B_pad - B), (0, 0)))

    grid = (B_pad // tm,)

    itemsize = jnp.dtype(x.dtype).itemsize
    cost = pl.CostEstimate(
        flops=2 * B_pad * F_pad * O_pad,
        transcendentals=0,
        bytes_accessed=(B_pad * F_pad + F_pad * O_pad + O_pad + B_pad * O_pad)
        * itemsize,
    )

    out = pl.pallas_call(
        _linear_relu_kernel,
        out_shape=jax.ShapeDtypeStruct((B_pad, O_pad), x.dtype),
        grid_spec=pltpu.PrefetchScalarGridSpec(
            num_scalar_prefetch=0,
            grid=grid,
            in_specs=[
                pl.BlockSpec((tm, F_pad), lambda i: (i, 0)),   # x rows for this step
                pl.BlockSpec((F_pad, O_pad), lambda i: (0, 0)),  # full W, VMEM-resident
                pl.BlockSpec((1, O_pad), lambda i: (0, 0)),      # full bias, resident
            ],
            out_specs=pl.BlockSpec((tm, O_pad), lambda i: (i, 0)),  # lane-dense output
        ),
        compiler_params=pltpu.CompilerParams(
            dimension_semantics=("parallel",),   # M axis shards across v7x cores
        ),
        cost_estimate=cost,
    )(x, w_t, b)

    if B_pad != B or O_pad != O:
        out = out[:B, :O]
    return out


class ResNetImageNetEncoderPallas:
    """JAX/Pallas re-implementation of ResNetImageNetEncoder.forward.

    Only the 'rgb_features' branch + visual_fc hot path is implemented; the
    pretrained resnet50 backbone / PIL preprocessing path is out of scope.
    """

    def __init__(self, feat_dim=2048, output_size=256, key=jax.random.PRNGKey(0)):
        # Deterministic nn.Linear-style init: U(-1/sqrt(fan_in), 1/sqrt(fan_in)).
        kw, kb = jax.random.split(key)
        bound = 1.0 / np.sqrt(feat_dim)
        # PyTorch Linear weight is [out, in]; store transposed [in, out] for the kernel.
        w = jax.random.uniform(kw, (output_size, feat_dim), jnp.float32, -bound, bound)
        self.w_t = jnp.asarray(w.T)                                  # [F, O]
        self.b = jax.random.uniform(kb, (1, output_size), jnp.float32, -bound, bound)
        self.output_shape = (output_size,)

    def __call__(self, observations):
        if "rgb_features" in observations:
            x = observations["rgb_features"].astype(jnp.float32)    # [B, F]
        else:
            # TODO(synk): pretrained resnet50 backbone path (checkpoint + host PIL
            # preprocessing) has no clean synthetic Pallas equivalent.
            raise NotImplementedError("backbone path not implemented")
        return visual_fc_pallas(x, self.w_t, self.b)


if __name__ == "__main__":
    key = jax.random.PRNGKey(0)
    k_feat, k_params = jax.random.split(key)

    # resnet50-style feature dim (matches the module's default backbone).
    B, F, O = 4, 2048, 256
    rgb_features = jax.random.normal(k_feat, (B, F), jnp.float32)

    enc = ResNetImageNetEncoderPallas(feat_dim=F, output_size=O, key=k_params)
    out = enc({"rgb_features": rgb_features})
    out = jax.block_until_ready(out)

    # Correctness check against plain-JAX reference of visual_fc.
    ref = jnp.maximum(rgb_features @ enc.w_t + enc.b, 0.0)
    assert out.shape == (B, O)
    np.testing.assert_allclose(np.asarray(out), np.asarray(ref), rtol=1e-5, atol=1e-5)

    print("KERNEL_OK")
</pallas_src>

<mosaic_0001>
module attributes {stable_mosaic.version = 11 : i64} {
  func.func @_linear_relu_kernel(%arg0: i32, %arg1: memref<8x2048xf32, #tpu.memory_space<vmem>>, %arg2: memref<2048x256xf32, #tpu.memory_space<vmem>>, %arg3: memref<1x256xf32, #tpu.memory_space<vmem>>, %arg4: memref<8x256xf32, #tpu.memory_space<vmem>>) attributes {dimension_semantics = [#tpu.dimension_semantics<parallel>], iteration_bounds = array<i64: 1>, scalar_prefetch = 0 : i64, scratch_operands = 0 : i64, tpu.core_type = #tpu.core_type<tc>, window_params = [{transform_indices = @transform_0, window_bounds = array<i64: 8, 2048>}, {pipeline_mode = #tpu.pipeline_mode<synchronous>, transform_indices = @transform_1, window_bounds = array<i64: 2048, 256>}, {pipeline_mode = #tpu.pipeline_mode<synchronous>, transform_indices = @transform_2, window_bounds = array<i64: 1, 256>}, {transform_indices = @transform_3, window_bounds = array<i64: 8, 256>}]} {
    %c0 = arith.constant 0 : index
    %c0_0 = arith.constant 0 : index
    %0 = vector.load %arg1[%c0, %c0_0] : memref<8x2048xf32, #tpu.memory_space<vmem>>, vector<8x2048xf32>
    %c0_1 = arith.constant 0 : index
    %c0_2 = arith.constant 0 : index
    %1 = vector.load %arg2[%c0_1, %c0_2] : memref<2048x256xf32, #tpu.memory_space<vmem>>, vector<2048x256xf32>
    %cst = arith.constant dense<0.000000e+00> : vector<8x256xf32>
    %2 = tpu.matmul %0, %1, %cst {dimension_numbers = #tpu.dot_dimension_numbers<[1], [0], [0], [1], [0, 0, 1, 1], [], []>} : vector<8x2048xf32>, vector<2048x256xf32>, vector<8x256xf32> -> vector<8x256xf32>
    %c0_3 = arith.constant 0 : index
    %c0_4 = arith.constant 0 : index
    %3 = vector.load %arg3[%c0_3, %c0_4] : memref<1x256xf32, #tpu.memory_space<vmem>>, vector<1x256xf32>
    %4 = vector.broadcast %3 : vector<1x256xf32> to vector<8x256xf32>
    %5 = arith.addf %2, %4 : vector<8x256xf32>
    %cst_5 = arith.constant 0.000000e+00 : f32
    %6 = vector.broadcast %cst_5 : f32 to vector<8x256xf32>
    %7 = arith.maximumf %5, %6 : vector<8x256xf32>
    %c0_6 = arith.constant 0 : index
    %c0_7 = arith.constant 0 : index
    %8 = vector.load %arg4[%c0_6, %c0_7] : memref<8x256xf32, #tpu.memory_space<vmem>>, vector<8x256xf32>
    tpu.vector_store %arg4[%c0_6, %c0_7], %7 {strides = array<i32>} : memref<8x256xf32, #tpu.memory_space<vmem>>, vector<8x256xf32>,
    return
  }
  func.func @transform_0(%arg0: i32) -> (i32, i32) {
    %c0_i32 = arith.constant 0 : i32
    %c0_i32_0 = arith.constant 0 : i32
    return %arg0, %c0_i32 : i32, i32
  }
  func.func @transform_1(%arg0: i32) -> (i32, i32) {
    %c0_i32 = arith.constant 0 : i32
    %c0_i32_0 = arith.constant 0 : i32
    %c0_i32_1 = arith.constant 0 : i32
    return %c0_i32, %c0_i32_0 : i32, i32
  }
  func.func @transform_2(%arg0: i32) -> (i32, i32) {
    %c0_i32 = arith.constant 0 : i32
    %c0_i32_0 = arith.constant 0 : i32
    %c0_i32_1 = arith.constant 0 : i32
    return %c0_i32, %c0_i32_0 : i32, i32
  }
  func.func @transform_3(%arg0: i32) -> (i32, i32) {
    %c0_i32 = arith.constant 0 : i32
    %c0_i32_0 = arith.constant 0 : i32
    return %arg0, %c0_i32 : i32, i32
  }
}

</mosaic_0001>

<llo_original>
// kernel: visual_fc_pallas.1
$region0: #{visual_fc_pallas.1}
  #allocation0 [shape = 'u32[]', space=smem, size = 0x4, offset = 0x4, fixed_abs, tag = 'smem constant byte address 0x4 - core index']
  #allocation1 [shape = 'u32[72,128]{1,0:T(1,128)}', space=vmem, size = 0x9000, scoped, tag = 'internal scratch']
  %s0 = inlined_call_operand.vmem [shape: f32[8,2048], index: 0, kind: input, shape index: {}]
  %s1 = inlined_call_operand.hbm [shape: f32[2048,256], index: 1, kind: input, shape index: {}]
  %s2 = inlined_call_operand.hbm [shape: f32[1,256], index: 2, kind: input, shape index: {}]
  %s3 = inlined_call_operand.vmem [shape: f32[8,256], index: 3, kind: output, shape index: {}]
  %s4 = sld [smem:[#allocation0]]
  $region30: #{visual_fc_pallas.1} parent=0
    _
  %s6 = ssub.s32 1, %s4
  %s7 = scalar_select 0, %s6, %s4
  $region1: #{visual_fc_pallas.1} parent=0
    #allocation2 [shape = 'u8[2097152]{0}', space=vmem, size = 0x200000, scoped, tag = 'input window, operand 1, single buffered']
    #allocation3 [shape = 's32[1]{0}', space=sflag, size = 0x4, scoped, tag = 'scoped memory for visual_fc_pallas.1']
    #allocation4 [shape = 'u8[1024]{0}', space=vmem, size = 0x400, scoped, tag = 'input window, operand 2, single buffered']
    #allocation5 [shape = 's32[1]{0}', space=sflag, size = 0x4, scoped, tag = 'scoped memory for visual_fc_pallas.1']
    %8 = vsyncpa [#allocation3], 0
    %9 = vsyncpa [#allocation5], 0
    // Predicated region
    $region2: #{visual_fc_pallas.1} parent=1 // pred_check
      _
    $region3: #{visual_fc_pallas.1} parent=1 // pred_check_branch
      %11 = sbr.rel (0) target = $region5
    $region4: #{visual_fc_pallas.1} parent=1 // pred_region
      _
    $region5: #{visual_fc_pallas.1} parent=1 // pred_fallthru
      _
    // Predicated region
    $region6: #{visual_fc_pallas.1} parent=1 // pred_check
      _
    $region7: #{visual_fc_pallas.1} parent=1 // pred_check_branch
      %13 = sbr.rel (0) target = $region9
    $region8: #{visual_fc_pallas.1} parent=1 // pred_region
      %15 = vsyncadd [#allocation3], 0
      %s16 = sshll.u32 %s1, 4
      %s17 = int_to_ptr.hbm [resolvable:$true] %s16
      %s18 = sshll.u32 [#allocation2], 4
      %s19 = int_to_ptr.vmem [resolvable:$true] %s18
      %24 = dma.hbm_to_vmem [thread:$0]  %s17, 65536, %s19, [#allocation3], 256, 256, 16
    $region9: #{visual_fc_pallas.1} parent=1 // pred_fallthru
      _
    // Predicated region
    $region10: #{visual_fc_pallas.1} parent=1 // pred_check
      _
    $region11: #{visual_fc_pallas.1} parent=1 // pred_check_branch
      %26 = sbr.rel (0) target = $region13
    $region12: #{visual_fc_pallas.1} parent=1 // pred_region
      %28 = vsyncadd [#allocation5], 0
      %s30 = sshll.u32 %s2, 4
      %s31 = int_to_ptr.hbm [resolvable:$true] %s30
      %s32 = sshll.u32 [#allocation4], 4
      %s33 = int_to_ptr.vmem [resolvable:$true] %s32
      %35 = dma.hbm_to_vmem [thread:$0]  %s31, 32, %s33, [#allocation5]
    $region13: #{visual_fc_pallas.1} parent=1 // pred_fallthru
      _
    // Predicated region
    $region14: #{visual_fc_pallas.1} parent=1 // pred_check
      _
    $region15: #{visual_fc_pallas.1} parent=1 // pred_check_branch
      %37 = sbr.rel (0) target = $region17
    $region16: #{visual_fc_pallas.1} parent=1 // pred_region
      %39 = dma.done [#allocation3], 65536
    $region17: #{visual_fc_pallas.1} parent=1 // pred_fallthru
      _
    // Predicated region
    $region18: #{visual_fc_pallas.1} parent=1 // pred_check
      _
    $region19: #{visual_fc_pallas.1} parent=1 // pred_check_branch
      %41 = sbr.rel (0) target = $region21
    $region20: #{visual_fc_pallas.1} parent=1 // pred_region
      %43 = dma.done [#allocation5], 32
    $region21: #{visual_fc_pallas.1} parent=1 // pred_fallthru
      _
    %v44 = vld [vmem:[%s0] sm:$0xff]
    %v45 = vld [vmem:[%s0 + $0x8] sm:$0xff]
    %v46 = vld [vmem:[%s0 + $0x10] sm:$0xff]
    %v47 = vld [vmem:[%s0 + $0x18] sm:$0xff]
    %v48 = vld [vmem:[%s0 + $0x20] sm:$0xff]
    %v49 = vld [vmem:[%s0 + $0x28] sm:$0xff]
    %v50 = vld [vmem:[%s0 + $0x30] sm:$0xff]
    %v51 = vld [vmem:[%s0 + $0x38] sm:$0xff]
    %v52 = vld [vmem:[%s0 + $0x40] sm:$0xff]
    %v53 = vld [vmem:[%s0 + $0x48] sm:$0xff]
    %v54 = vld [vmem:[%s0 + $0x50] sm:$0xff]
    %v55 = vld [vmem:[%s0 + $0x58] sm:$0xff]
    %v56 = vld [vmem:[%s0 + $0x60] sm:$0xff]
    %v57 = vld [vmem:[%s0 + $0x68] sm:$0xff]
    %v58 = vld [vmem:[%s0 + $0x70] sm:$0xff]
    %v59 = vld [vmem:[%s0 + $0x78] sm:$0xff]
    %v60 = vld [vmem:[#allocation2] sm:$0xff]
    %v61 = vld [vmem:[#allocation2 + $0x8] sm:$0xff]
    %v62 = vld [vmem:[#allocation2 + $0x10] sm:$0xff]
    %v63 = vld [vmem:[#allocation2 + $0x18] sm:$0xff]
    %v64 = vld [vmem:[#allocation2 + $0x20] sm:$0xff]
    %v65 = vld [vmem:[#allocation2 + $0x28] sm:$0xff]
    %v66 = vld [vmem:[#allocation2 + $0x30] sm:$0xff]
    %v67 = vld [vmem:[#allocation2 + $0x38] sm:$0xff]
    %v68 = vld [vmem:[#allocation2 + $0x40] sm:$0xff]
    %v69 = vld [vmem:[#allocation2 + $0x48] sm:$0xff]
    %v70 = vld [vmem:[#allocation2 + $0x50] sm:$0xff]
    %v71 = vld [vmem:[#allocation2 + $0x58] sm:$0xff]
    %v72 = vld [vmem:[#allocation2 + $0x60] sm:$0xff]
    %v73 = vld [vmem:[#allocation2 + $0x68] sm:$0xff]
    %v74 = vld [vmem:[#allocation2 + $0x70] sm:$0xff]
    %v75 = vld [vmem:[#allocation2 + $0x78] sm:$0xff]
    %v76 = vld [vmem:[#allocation2 + $0x80] sm:$0xff]
    %v77 = vld [vmem:[#allocation2 + $0x88] sm:$0xff]
    %v78 = vld [vmem:[#allocation2 + $0x90] sm:$0xff]
    %v79 = vld [vmem:[#allocation2 + $0x98] sm:$0xff]
    %v80 = vld [vmem:[#allocation2 + $0xa0] sm:$0xff]
    %v81 = vld [vmem:[#allocation2 + $0xa8] sm:$0xff]
    %v82 = vld [vmem:[#allocation2 + $0xb0] sm:$0xff]
    %v83 = vld [vmem:[#allocation2 + $0xb8] sm:$0xff]
    %v84 = vld [vmem:[#allocation2 + $0xc0] sm:$0xff]
    %v85 = vld [vmem:[#allocation2 + $0xc8] sm:$0xff]
    %v86 = vld [vmem:[#allocation2 + $0xd0] sm:$0xff]
    %v87 = vld [vmem:[#allocation2 + $0xd8] sm:$0xff]
    %v88 = vld [vmem:[#allocation2 + $0xe0] sm:$0xff]
    %v89 = vld [vmem:[#allocation2 + $0xe8] sm:$0xff]
    %v90 = vld [vmem:[#allocation2 + $0xf0] sm:$0xff]
    %v91 = vld [vmem:[#allocation2 + $0xf8] sm:$0xff]
    %v92 = vld [vmem:[#allocation2 + $0x100] sm:$0xff]
    %v93 = vld [vmem:[#allocation2 + $0x108] sm:$0xff]
    %v94 = vld [vmem:[#allocation2 + $0x110] sm:$0xff]
    %v95 = vld [vmem:[#allocation2 + $0x118] sm:$0xff]
    %v96 = vld [vmem:[#allocation2 + $0x120] sm:$0xff]
    %v97 = vld [vmem:[#allocation2 + $0x128] sm:$0xff]
    %v98 = vld [vmem:[#allocation2 + $0x130] sm:$0xff]
    %v99 = vld [vmem:[#allocation2 + $0x138] sm:$0xff]
    %v100 = vld [vmem:[#allocation2 + $0x140] sm:$0xff]
    %v101 = vld [vmem:[#allocation2 + $0x148] sm:$0xff]
    %v102 = vld [vmem:[#allocation2 + $0x150] sm:$0xff]
    %v103 = vld [vmem:[#allocation2 + $0x158] sm:$0xff]
    %v104 = vld [vmem:[#allocation2 + $0x160] sm:$0xff]
    %v105 = vld [vmem:[#allocation2 + $0x168] sm:$0xff]
    %v106 = vld [vmem:[#allocation2 + $0x170] sm:$0xff]
    %v107 = vld [vmem:[#allocation2 + $0x178] sm:$0xff]
    %v108 = vld [vmem:[#allocation2 + $0x180] sm:$0xff]
    %v109 = vld [vmem:[#allocation2 + $0x188] sm:$0xff]
    %v110 = vld [vmem:[#allocation2 + $0x190] sm:$0xff]
    %v111 = vld [vmem:[#allocation2 + $0x198] sm:$0xff]
    %v112 = vld [vmem:[#allocation2 + $0x1a0] sm:$0xff]
    %v113 = vld [vmem:[#allocation2 + $0x1a8] sm:$0xff]
    %v114 = vld [vmem:[#allocation2 + $0x1b0] sm:$0xff]
    %v115 = vld [vmem:[#allocation2 + $0x1b8] sm:$0xff]
    %v116 = vld [vmem:[#allocation2 + $0x1c0] sm:$0xff]
    %v117 = vld [vmem:[#allocation2 + $0x1c8] sm:$0xff]
    %v118 = vld [vmem:[#allocation2 + $0x1d0] sm:$0xff]
    %v119 = vld [vmem:[#allocation2 + $0x1d8] sm:$0xff]
    %v120 = vld [vmem:[#allocation2 + $0x1e0] sm:$0xff]
    %v121 = vld [vmem:[#allocation2 + $0x1e8] sm:$0xff]
    %v122 = vld [vmem:[#allocation2 + $0x1f0] sm:$0xff]
    %v123 = vld [vmem:[#allocation2 + $0x1f8] sm:$0xff]
    %v124 = vld [vmem:[#allocation2 + $0x200] sm:$0xff]
    %v125 = vld [vmem:[#allocation2 + $0x208] sm:$0xff]
    %v126 = vld [vmem:[#allocation2 + $0x210] sm:$0xff]
    %v127 = vld [vmem:[#allocation2 + $0x218] sm:$0xff]
    %v128 = vld [vmem:[#allocation2 + $0x220] sm:$0xff]
    %v129 = vld [vmem:[#allocation2 + $0x228] sm:$0xff]
    %v130 = vld [vmem:[#allocation2 + $0x230] sm:$0xff]
    %v131 = vld [vmem:[#allocation2 + $0x238] sm:$0xff]
    %v132 = vld [vmem:[#allocation2 + $0x240] sm:$0xff]
    %v133 = vld [vmem:[#allocation2 + $0x248] sm:$0xff]
    %v134 = vld [vmem:[#allocation2 + $0x250] sm:$0xff]
    %v135 = vld [vmem:[#allocation2 + $0x258] sm:$0xff]
    %v136 = vld [vmem:[#allocation2 + $0x260] sm:$0xff]
    %v137 = vld [vmem:[#allocation2 + $0x268] sm:$0xff]
    %v138 = vld [vmem:[#allocation2 + $0x270] sm:$0xff]
    %v139 = vld [vmem:[#allocation2 + $0x278] sm:$0xff]
    %v140 = vld [vmem:[#allocation2 + $0x280] sm:$0xff]
    %v141 = vld [vmem:[#allocation2 + $0x288] sm:$0xff]
    %v142 = vld [vmem:[#allocation2 + $0x290] sm:$0xff]
    %v143 = vld [vmem:[#allocation2 + $0x298] sm:$0xff]
    %v144 = vld [vmem:[#allocation2 + $0x2a0] sm:$0xff]
    %v145 = vld [vmem:[#allocation2 + $0x2a8] sm:$0xff]
    %v146 = vld [vmem:[#allocation2 + $0x2b0] sm:$0xff]
    %v147 = vld [vmem:[#allocation2 + $0x2b8] sm:$0xff]
    %v148 = vld [vmem:[#allocation2 + $0x2c0] sm:$0xff]
    %v149 = vld [vmem:[#allocation2 + $0x2c8] sm:$0xff]
    %v150 = vld [vmem:[#allocation2 + $0x2d0] sm:$0xff]
    %v151 = vld [vmem:[#allocation2 + $0x2d8] sm:$0xff]
    %v152 = vld [vmem:[#allocation2 + $0x2e0] sm:$0xff]
    %v153 = vld [vmem:[#allocation2 + $0x2e8] sm:$0xff]
    %v154 = vld [vmem:[#allocation2 + $0x2f0] sm:$0xff]
    %v155 = vld [vmem:[#allocation2 + $0x2f8] sm:$0xff]
    %v156 = vld [vmem:[#allocation2 + $0x300] sm:$0xff]
    %v157 = vld [vmem:[#allocation2 + $0x308] sm:$0xff]
    %v158 = vld [vmem:[#allocation2 + $0x310] sm:$0xff]
    %v159 = vld [vmem:[#allocation2 + $0x318] sm:$0xff]
    %v160 = vld [vmem:[#allocation2 + $0x320] sm:$0xff]
    %v161 = vld [vmem:[#allocation2 + $0x328] sm:$0xff]
    %v162 = vld [vmem:[#allocation2 + $0x330] sm:$0xff]
    %v163 = vld [vmem:[#allocation2 + $0x338] sm:$0xff]
    %v164 = vld [vmem:[#allocation2 + $0x340] sm:$0xff]
    %v165 = vld [vmem:[#allocation2 + $0x348] sm:$0xff]
    %v166 = vld [vmem:[#allocation2 + $0x350] sm:$0xff]
    %v167 = vld [vmem:[#allocation2 + $0x358] sm:$0xff]
    %v168 = vld [vmem:[#allocation2 + $0x360] sm:$0xff]
    %v169 = vld [vmem:[#allocation2 + $0x368] sm:$0xff]
    %v170 = vld [vmem:[#allocation2 + $0x370] sm:$0xff]
    %v171 = vld [vmem:[#allocation2 + $0x378] sm:$0xff]
    %v172 = vld [vmem:[#allocation2 + $0x380] sm:$0xff]
    %v173 = vld [vmem:[#allocation2 + $0x388] sm:$0xff]
    %v174 = vld [vmem:[#allocation2 + $0x390] sm:$0xff]
    %v175 = vld [vmem:[#allocation2 + $0x398] sm:$0xff]
    %v176 = vld [vmem:[#allocation2 + $0x3a0] sm:$0xff]
    %v177 = vld [vmem:[#allocation2 + $0x3a8] sm:$0xff]
    %v178 = vld [vmem:[#allocation2 + $0x3b0] sm:$0xff]
    %v179 = vld [vmem:[#allocation2 + $0x3b8] sm:$0xff]
    %v180 = vld [vmem:[#allocation2 + $0x3c0] sm:$0xff]
    %v181 = vld [vmem:[#allocation2 + $0x3c8] sm:$0xff]
    %v182 = vld [vmem:[#allocation2 + $0x3d0] sm:$0xff]
    %v183 = vld [vmem:[#allocation2 + $0x3d8] sm:$0xff]
    %v184 = vld [vmem:[#allocation2 + $0x3e0] sm:$0xff]
    %v185 = vld [vmem:[#allocation2 + $0x3e8] sm:$0xff]
    %v186 = vld [vmem:[#allocation2 + $0x3f0] sm:$0xff]
    %v187 = vld [vmem:[#allocation2 + $0x3f8] sm:$0xff]
    %v188 = vld [vmem:[#allocation2 + $0x400] sm:$0xff]
    %v189 = vld [vmem:[#allocation2 + $0x408] sm:$0xff]
    %v190 = vld [vmem:[#allocation2 + $0x410] sm:$0xff]
    %v191 = vld [vmem:[#allocation2 + $0x418] sm:$0xff]
    %v192 = vld [vmem:[#allocation2 + $0x420] sm:$0xff]
    %v193 = vld [vmem:[#allocation2 + $0x428] sm:$0xff]
    %v194 = vld [vmem:[#allocation2 + $0x430] sm:$0xff]
    %v195 = vld [vmem:[#allocation2 + $0x438] sm:$0xff]
    %v196 = vld [vmem:[#allocation2 + $0x440] sm:$0xff]
    %v197 = vld [vmem:[#allocation2 + $0x448] sm:$0xff]
    %v198 = vld [vmem:[#allocation2 + $0x450] sm:$0xff]
    %v199 = vld [vmem:[#allocation2 + $0x458] sm:$0xff]
    %v200 = vld [vmem:[#allocation2 + $0x460] sm:$0xff]
    %v201 = vld [vmem:[#allocation2 + $0x468] sm:$0xff]
    %v202 = vld [vmem:[#allocation2 + $0x470] sm:$0xff]
    %v203 = vld [vmem:[#allocation2 + $0x478] sm:$0xff]
    %v204 = vld [vmem:[#allocation2 + $0x480] sm:$0xff]
    %v205 = vld [vmem:[#allocation2 + $0x488] sm:$0xff]
    %v206 = vld [vmem:[#allocation2 + $0x490] sm:$0xff]
    %v207 = vld [vmem:[#allocation2 + $0x498] sm:$0xff]
    %v208 = vld [vmem:[#allocation2 + $0x4a0] sm:$0xff]
    %v209 = vld [vmem:[#allocation2 + $0x4a8] sm:$0xff]
    %v210 = vld [vmem:[#allocation2 + $0x4b0] sm:$0xff]
    %v211 = vld [vmem:[#allocation2 + $0x4b8] sm:$0xff]
    %v212 = vld [vmem:[#allocation2 + $0x4c0] sm:$0xff]
    %v213 = vld [vmem:[#allocation2 + $0x4c8] sm:$0xff]
    %v214 = vld [vmem:[#allocation2 + $0x4d0] sm:$0xff]
    %v215 = vld [vmem:[#allocation2 + $0x4d8] sm:$0xff]
    %v216 = vld [vmem:[#allocation2 + $0x4e0] sm:$0xff]
    %v217 = vld [vmem:[#allocation2 + $0x4e8] sm:$0xff]
    %v218 = vld [vmem:[#allocation2 + $0x4f0] sm:$0xff]
    %v219 = vld [vmem:[#allocation2 + $0x4f8] sm:$0xff]
    %v220 = vld [vmem:[#allocation2 + $0x500] sm:$0xff]
    %v221 = vld [vmem:[#allocation2 + $0x508] sm:$0xff]
    %v222 = vld [vmem:[#allocation2 + $0x510] sm:$0xff]
    %v223 = vld [vmem:[#allocation2 + $0x518] sm:$0xff]
    %v224 = vld [vmem:[#allocation2 + $0x520] sm:$0xff]
    %v225 = vld [vmem:[#allocation2 + $0x528] sm:$0xff]
    %v226 = vld [vmem:[#allocation2 + $0x530] sm:$0xff]
    %v227 = vld [vmem:[#allocation2 + $0x538] sm:$0xff]
    %v228 = vld [vmem:[#allocation2 + $0x540] sm:$0xff]
    %v229 = vld [vmem:[#allocation2 + $0x548] sm:$0xff]
    %v230 = vld [vmem:[#allocation2 + $0x550] sm:$0xff]
    %v231 = vld [vmem:[#allocation2 + $0x558] sm:$0xff]
    %v232 = vld [vmem:[#allocation2 + $0x560] sm:$0xff]
    %v233 = vld [vmem:[#allocation2 + $0x568] sm:$0xff]
    %v234 = vld [vmem:[#allocation2 + $0x570] sm:$0xff]
    %v235 = vld [vmem:[#allocation2 + $0x578] sm:$0xff]
    %v236 = vld [vmem:[#allocation2 + $0x580] sm:$0xff]
    %v237 = vld [vmem:[#allocation2 + $0x588] sm:$0xff]
    %v238 = vld [vmem:[#allocation2 + $0x590] sm:$0xff]
    %v239 = vld [vmem:[#allocation2 + $0x598] sm:$0xff]
    %v240 = vld [vmem:[#allocation2 + $0x5a0] sm:$0xff]
    %v241 = vld [vmem:[#allocation2 + $0x5a8] sm:$0xff]
    %v242 = vld [vmem:[#allocation2 + $0x5b0] sm:$0xff]
    %v243 = vld [vmem:[#allocation2 + $0x5b8] sm:$0xff]
    %v244 = vld [vmem:[#allocation2 + $0x5c0] sm:$0xff]
    %v245 = vld [vmem:[#allocation2 + $0x5c8] sm:$0xff]
    %v246 = vld [vmem:[#allocation2 + $0x5d0] sm:$0xff]
    %v247 = vld [vmem:[#allocation2 + $0x5d8] sm:$0xff]
    %v248 = vld [vmem:[#allocation2 + $0x5e0] sm:$0xff]
    %v249 = vld [vmem:[#allocation2 + $0x5e8] sm:$0xff]
    %v250 = vld [vmem:[#allocation2 + $0x5f0] sm:$0xff]
    %v251 = vld [vmem:[#allocation2 + $0x5f8] sm:$0xff]
    %v252 = vld [vmem:[#allocation2 + $0x600] sm:$0xff]
    %v253 = vld [vmem:[#allocation2 + $0x608] sm:$0xff]
    %v254 = vld [vmem:[#allocation2 + $0x610] sm:$0xff]
    %v255 = vld [vmem:[#allocation2 + $0x618] sm:$0xff]
    %v256 = vld [vmem:[#allocation2 + $0x620] sm:$0xff]
    %v257 = vld [vmem:[#allocation2 + $0x628] sm:$0xff]
    %v258 = vld [vmem:[#allocation2 + $0x630] sm:$0xff]
    %v259 = vld [vmem:[#allocation2 + $0x638] sm:$0xff]
    %v260 = vld [vmem:[#allocation2 + $0x640] sm:$0xff]
    %v261 = vld [vmem:[#allocation2 + $0x648] sm:$0xff]
    %v262 = vld [vmem:[#allocation2 + $0x650] sm:$0xff]
    %v263 = vld [vmem:[#allocation2 + $0x658] sm:$0xff]
    %v264 = vld [vmem:[#allocation2 + $0x660] sm:$0xff]
    %v265 = vld [vmem:[#allocation2 + $0x668] sm:$0xff]
    %v266 = vld [vmem:[#allocation2 + $0x670] sm:$0xff]
    %v267 = vld [vmem:[#allocation2 + $0x678] sm:$0xff]
    %v268 = vld [vmem:[#allocation2 + $0x680] sm:$0xff]
    %v269 = vld [vmem:[#allocation2 + $0x688] sm:$0xff]
    %v270 = vld [vmem:[#allocation2 + $0x690] sm:$0xff]
    %v271 = vld [vmem:[#allocation2 + $0x698] sm:$0xff]
    %v272 = vld [vmem:[#allocation2 + $0x6a0] sm:$0xff]
    %v273 = vld [vmem:[#allocation2 + $0x6a8] sm:$0xff]
    %v274 = vld [vmem:[#allocation2 + $0x6b0] sm:$0xff]
    %v275 = vld [vmem:[#allocation2 + $0x6b8] sm:$0xff]
    %v276 = vld [vmem:[#allocation2 + $0x6c0] sm:$0xff]
    %v277 = vld [vmem:[#allocation2 + $0x6c8] sm:$0xff]
    %v278 = vld [vmem:[#allocation2 + $0x6d0] sm:$0xff]
    %v279 = vld [vmem:[#allocation2 + $0x6d8] sm:$0xff]
    %v280 = vld [vmem:[#allocation2 + $0x6e0] sm:$0xff]
    %v281 = vld [vmem:[#allocation2 + $0x6e8] sm:$0xff]
    %v282 = vld [vmem:[#allocation2 + $0x6f0] sm:$0xff]
    %v283 = vld [vmem:[#allocation2 + $0x6f8] sm:$0xff]
    %v284 = vld [vmem:[#allocation2 + $0x700] sm:$0xff]
    %v285 = vld [vmem:[#allocation2 + $0x708] sm:$0xff]
    %v286 = vld [vmem:[#allocation2 + $0x710] sm:$0xff]
    %v287 = vld [vmem:[#allocation2 + $0x718] sm:$0xff]
    %v288 = vld [vmem:[#allocation2 + $0x720] sm:$0xff]
    %v289 = vld [vmem:[#allocation2 + $0x728] sm:$0xff]
    %v290 = vld [vmem:[#allocation2 + $0x730] sm:$0xff]
    %v291 = vld [vmem:[#allocation2 + $0x738] sm:$0xff]
    %v292 = vld [vmem:[#allocation2 + $0x740] sm:$0xff]
    %v293 = vld [vmem:[#allocation2 + $0x748] sm:$0xff]
    %v294 = vld [vmem:[#allocation2 + $0x750] sm:$0xff]
    %v295 = vld [vmem:[#allocation2 + $0x758] sm:$0xff]
    %v296 = vld [vmem:[#allocation2 + $0x760] sm:$0xff]
    %v297 = vld [vmem:[#allocation2 + $0x768] sm:$0xff]
    %v298 = vld [vmem:[#allocation2 + $0x770] sm:$0xff]
    %v299 = vld [vmem:[#allocation2 + $0x778] sm:$0xff]
    %v300 = vld [vmem:[#allocation2 + $0x780] sm:$0xff]
    %v301 = vld [vmem:[#allocation2 + $0x788] sm:$0xff]
    %v302 = vld [vmem:[#allocation2 + $0x790] sm:$0xff]
    %v303 = vld [vmem:[#allocation2 + $0x798] sm:$0xff]
    %v304 = vld [vmem:[#allocation2 + $0x7a0] sm:$0xff]
    %v305 = vld [vmem:[#allocation2 + $0x7a8] sm:$0xff]
    %v306 = vld [vmem:[#allocation2 + $0x7b0] sm:$0xff]
    %v307 = vld [vmem:[#allocation2 + $0x7b8] sm:$0xff]
    %v308 = vld [vmem:[#allocation2 + $0x7c0] sm:$0xff]
    %v309 = vld [vmem:[#allocation2 + $0x7c8] sm:$0xff]
    %v310 = vld [vmem:[#allocation2 + $0x7d0] sm:$0xff]
    %v311 = vld [vmem:[#allocation2 + $0x7d8] sm:$0xff]
    %v312 = vld [vmem:[#allocation2 + $0x7e0] sm:$0xff]
    %v313 = vld [vmem:[#allocation2 + $0x7e8] sm:$0xff]
    %v314 = vld [vmem:[#allocation2 + $0x7f0] sm:$0xff]
    %v315 = vld [vmem:[#allocation2 + $0x7f8] sm:$0xff]
    %v316 = vld [vmem:[#allocation2 + $0x800] sm:$0xff]
    %v317 = vld [vmem:[#allocation2 + $0x808] sm:$0xff]
    %v318 = vld [vmem:[#allocation2 + $0x810] sm:$0xff]
    %v319 = vld [vmem:[#allocation2 + $0x818] sm:$0xff]
    %v320 = vld [vmem:[#allocation2 + $0x820] sm:$0xff]
    %v321 = vld [vmem:[#allocation2 + $0x828] sm:$0xff]
    %v322 = vld [vmem:[#allocation2 + $0x830] sm:$0xff]
    %v323 = vld [vmem:[#allocation2 + $0x838] sm:$0xff]
    %v324 = vld [vmem:[#allocation2 + $0x840] sm:$0xff]
    %v325 = vld [vmem:[#allocation2 + $0x848] sm:$0xff]
    %v326 = vld [vmem:[#allocation2 + $0x850] sm:$0xff]
    %v327 = vld [vmem:[#allocation2 + $0x858] sm:$0xff]
    %v328 = vld [vmem:[#allocation2 + $0x860] sm:$0xff]
    %v329 = vld [vmem:[#allocation2 + $0x868] sm:$0xff]
    %v330 = vld [vmem:[#allocation2 + $0x870] sm:$0xff]
    %v331 = vld [vmem:[#allocation2 + $0x878] sm:$0xff]
    %v332 = vld [vmem:[#allocation2 + $0x880] sm:$0xff]
    %v333 = vld [vmem:[#allocation2 + $0x888] sm:$0xff]
    %v334 = vld [vmem:[#allocation2 + $0x890] sm:$0xff]
    %v335 = vld [vmem:[#allocation2 + $0x898] sm:$0xff]
    %v336 = vld [vmem:[#allocation2 + $0x8a0] sm:$0xff]
    %v337 = vld [vmem:[#allocation2 + $0x8a8] sm:$0xff]
    %v338 = vld [vmem:[#allocation2 + $0x8b0] sm:$0xff]
    %v339 = vld [vmem:[#allocation2 + $0x8b8] sm:$0xff]
    %v340 = vld [vmem:[#allocation2 + $0x8c0] sm:$0xff]
    %v341 = vld [vmem:[#allocation2 + $0x8c8] sm:$0xff]
    %v342 = vld [vmem:[#allocation2 + $0x8d0] sm:$0xff]
    %v343 = vld [vmem:[#allocation2 + $0x8d8] sm:$0xff]
    %v344 = vld [vmem:[#allocation2 + $0x8e0] sm:$0xff]
    %v345 = vld [vmem:[#allocation2 + $0x8e8] sm:$0xff]
    %v346 = vld [vmem:[#allocation2 + $0x8f0] sm:$0xff]
    %v347 = vld [vmem:[#allocation2 + $0x8f8] sm:$0xff]
    %v348 = vld [vmem:[#allocation2 + $0x900] sm:$0xff]
    %v349 = vld [vmem:[#allocation2 + $0x908] sm:$0xff]
    %v350 = vld [vmem:[#allocation2 + $0x910] sm:$0xff]
    %v351 = vld [vmem:[#allocation2 + $0x918] sm:$0xff]
    %v352 = vld [vmem:[#allocation2 + $0x920] sm:$0xff]
    %v353 = vld [vmem:[#allocation2 + $0x928] sm:$0xff]
    %v354 = vld [vmem:[#allocation2 + $0x930] sm:$0xff]
    %v355 = vld [vmem:[#allocation2 + $0x938] sm:$0xff]
    %v356 = vld [vmem:[#allocation2 + $0x940] sm:$0xff]
    %v357 = vld [vmem:[#allocation2 + $0x948] sm:$0xff]
    %v358 = vld [vmem:[#allocation2 + $0x950] sm:$0xff]
    %v359 = vld [vmem:[#allocation2 + $0x958] sm:$0xff]
    %v360 = vld [vmem:[#allocation2 + $0x960] sm:$0xff]
    %v361 = vld [vmem:[#allocation2 + $0x968] sm:$0xff]
    %v362 = vld [vmem:[#allocation2 + $0x970] sm:$0xff]
    %v363 = vld [vmem:[#allocation2 + $0x978] sm:$0xff]
    %v364 = vld [vmem:[#allocation2 + $0x980] sm:$0xff]
    %v365 = vld [vmem:[#allocation2 + $0x988] sm:$0xff]
    %v366 = vld [vmem:[#allocation2 + $0x990] sm:$0xff]
    %v367 = vld [vmem:[#allocation2 + $0x998] sm:$0xff]
    %v368 = vld [vmem:[#allocation2 + $0x9a0] sm:$0xff]
    %v369 = vld [vmem:[#allocation2 + $0x9a8] sm:$0xff]
    %v370 = vld [vmem:[#allocation2 + $0x9b0] sm:$0xff]
    %v371 = vld [vmem:[#allocation2 + $0x9b8] sm:$0xff]
    %v372 = vld [vmem:[#allocation2 + $0x9c0] sm:$0xff]
    %v373 = vld [vmem:[#allocation2 + $0x9c8] sm:$0xff]
    %v374 = vld [vmem:[#allocation2 + $0x9d0] sm:$0xff]
    %v375 = vld [vmem:[#allocation2 + $0x9d8] sm:$0xff]
    %v376 = vld [vmem:[#allocation2 + $0x9e0] sm:$0xff]
    %v377 = vld [vmem:[#allocation2 + $0x9e8] sm:$0xff]
    %v378 = vld [vmem:[#allocation2 + $0x9f0] sm:$0xff]
    %v379 = vld [vmem:[#allocation2 + $0x9f8] sm:$0xff]
    %v380 = vld [vmem:[#allocation2 + $0xa00] sm:$0xff]
    %v381 = vld [vmem:[#allocation2 + $0xa08] sm:$0xff]
    %v382 = vld [vmem:[#allocation2 + $0xa10] sm:$0xff]
    %v383 = vld [vmem:[#allocation2 + $0xa18] sm:$0xff]
    %v384 = vld [vmem:[#allocation2 + $0xa20] sm:$0xff]
    %v385 = vld [vmem:[#allocation2 + $0xa28] sm:$0xff]
    %v386 = vld [vmem:[#allocation2 + $0xa30] sm:$0xff]
    %v387 = vld [vmem:[#allocation2 + $0xa38] sm:$0xff]
    %v388 = vld [vmem:[#allocation2 + $0xa40] sm:$0xff]
    %v389 = vld [vmem:[#allocation2 + $0xa48] sm:$0xff]
    %v390 = vld [vmem:[#allocation2 + $0xa50] sm:$0xff]
    %v391 = vld [vmem:[#allocation2 + $0xa58] sm:$0xff]
    %v392 = vld [vmem:[#allocation2 + $0xa60] sm:$0xff]
    %v393 = vld [vmem:[#allocation2 + $0xa68] sm:$0xff]
    %v394 = vld [vmem:[#allocation2 + $0xa70] sm:$0xff]
    %v395 = vld [vmem:[#allocation2 + $0xa78] sm:$0xff]
    %v396 = vld [vmem:[#allocation2 + $0xa80] sm:$0xff]
    %v397 = vld [vmem:[#allocation2 + $0xa88] sm:$0xff]
    %v398 = vld [vmem:[#allocation2 + $0xa90] sm:$0xff]
    %v399 = vld [vmem:[#allocation2 + $0xa98] sm:$0xff]
    %v400 = vld [vmem:[#allocation2 + $0xaa0] sm:$0xff]
    %v401 = vld [vmem:[#allocation2 + $0xaa8] sm:$0xff]
    %v402 = vld [vmem:[#allocation2 + $0xab0] sm:$0xff]
    %v403 = vld [vmem:[#allocation2 + $0xab8] sm:$0xff]
    %v404 = vld [vmem:[#allocation2 + $0xac0] sm:$0xff]
    %v405 = vld [vmem:[#allocation2 + $0xac8] sm:$0xff]
    %v406 = vld [vmem:[#allocation2 + $0xad0] sm:$0xff]
    %v407 = vld [vmem:[#allocation2 + $0xad8] sm:$0xff]
    %v408 = vld [vmem:[#allocation2 + $0xae0] sm:$0xff]
    %v409 = vld [vmem:[#allocation2 + $0xae8] sm:$0xff]
    %v410 = vld [vmem:[#allocation2 + $0xaf0] sm:$0xff]
    %v411 = vld [vmem:[#allocation2 + $0xaf8] sm:$0xff]
    %v412 = vld [vmem:[#allocation2 + $0xb00] sm:$0xff]
    %v413 = vld [vmem:[#allocation2 + $0xb08] sm:$0xff]
    %v414 = vld [vmem:[#allocation2 + $0xb10] sm:$0xff]
    %v415 = vld [vmem:[#allocation2 + $0xb18] sm:$0xff]
    %v416 = vld [vmem:[#allocation2 + $0xb20] sm:$0xff]
    %v417 = vld [vmem:[#allocation2 + $0xb28] sm:$0xff]
    %v418 = vld [vmem:[#allocation2 + $0xb30] sm:$0xff]
    %v419 = vld [vmem:[#allocation2 + $0xb38] sm:$0xff]
    %v420 = vld [vmem:[#allocation2 + $0xb40] sm:$0xff]
    %v421 = vld [vmem:[#allocation2 + $0xb48] sm:$0xff]
    %v422 = vld [vmem:[#allocation2 + $0xb50] sm:$0xff]
    %v423 = vld [vmem:[#allocation2 + $0xb58] sm:$0xff]
    %v424 = vld [vmem:[#allocation2 + $0xb60] sm:$0xff]
    %v425 = vld [vmem:[#allocation2 + $0xb68] sm:$0xff]
    %v426 = vld [vmem:[#allocation2 + $0xb70] sm:$0xff]
    %v427 = vld [vmem:[#allocation2 + $0xb78] sm:$0xff]
    %v428 = vld [vmem:[#allocation2 + $0xb80] sm:$0xff]
    %v429 = vld [vmem:[#allocation2 + $0xb88] sm:$0xff]
    %v430 = vld [vmem:[#allocation2 + $0xb90] sm:$0xff]
    %v431 = vld [vmem:[#allocation2 + $0xb98] sm:$0xff]
    %v432 = vld [vmem:[#allocation2 + $0xba0] sm:$0xff]
    %v433 = vld [vmem:[#allocation2 + $0xba8] sm:$0xff]
    %v434 = vld [vmem:[#allocation2 + $0xbb0] sm:$0xff]
    %v435 = vld [vmem:[#allocation2 + $0xbb8] sm:$0xff]
    %v436 = vld [vmem:[#allocation2 + $0xbc0] sm:$0xff]
    %v437 = vld [vmem:[#allocation2 + $0xbc8] sm:$0xff]
    %v438 = vld [vmem:[#allocation2 + $0xbd0] sm:$0xff]
    %v439 = vld [vmem:[#allocation2 + $0xbd8] sm:$0xff]
    %v440 = vld [vmem:[#allocation2 + $0xbe0] sm:$0xff]
    %v441 = vld [vmem:[#allocation2 + $0xbe8] sm:$0xff]
    %v442 = vld [vmem:[#allocation2 + $0xbf0] sm:$0xff]
    %v443 = vld [vmem:[#allocation2 + $0xbf8] sm:$0xff]
    %v444 = vld [vmem:[#allocation2 + $0xc00] sm:$0xff]
    %v445 = vld [vmem:[#allocation2 + $0xc08] sm:$0xff]
    %v446 = vld [vmem:[#allocation2 + $0xc10] sm:$0xff]
    %v447 = vld [vmem:[#allocation2 + $0xc18] sm:$0xff]
    %v448 = vld [vmem:[#allocation2 + $0xc20] sm:$0xff]
    %v449 = vld [vmem:[#allocation2 + $0xc28] sm:$0xff]
    %v450 = vld [vmem:[#allocation2 + $0xc30] sm:$0xff]
    %v451 = vld [vmem:[#allocation2 + $0xc38] sm:$0xff]
    %v452 = vld [vmem:[#allocation2 + $0xc40] sm:$0xff]
    %v453 = vld [vmem:[#allocation2 + $0xc48] sm:$0xff]
    %v454 = vld [vmem:[#allocation2 + $0xc50] sm:$0xff]
    %v455 = vld [vmem:[#allocation2 + $0xc58] sm:$0xff]
    %v456 = vld [vmem:[#allocation2 + $0xc60] sm:$0xff]
    %v457 = vld [vmem:[#allocation2 + $0xc68] sm:$0xff]
    %v458 = vld [vmem:[#allocation2 + $0xc70] sm:$0xff]
    %v459 = vld [vmem:[#allocation2 + $0xc78] sm:$0xff]
    %v460 = vld [vmem:[#allocation2 + $0xc80] sm:$0xff]
    %v461 = vld [vmem:[#allocation2 + $0xc88] sm:$0xff]
    %v462 = vld [vmem:[#allocation2 + $0xc90] sm:$0xff]
    %v463 = vld [vmem:[#allocation2 + $0xc98] sm:$0xff]
    %v464 = vld [vmem:[#allocation2 + $0xca0] sm:$0xff]
    %v465 = vld [vmem:[#allocation2 + $0xca8] sm:$0xff]
    %v466 = vld [vmem:[#allocation2 + $0xcb0] sm:$0xff]
    %v467 = vld [vmem:[#allocation2 + $0xcb8] sm:$0xff]
    %v468 = vld [vmem:[#allocation2 + $0xcc0] sm:$0xff]
    %v469 = vld [vmem:[#allocation2 + $0xcc8] sm:$0xff]
    %v470 = vld [vmem:[#allocation2 + $0xcd0] sm:$0xff]
    %v471 = vld [vmem:[#allocation2 + $0xcd8] sm:$0xff]
    %v472 = vld [vmem:[#allocation2 + $0xce0] sm:$0xff]
    %v473 = vld [vmem:[#allocation2 + $0xce8] sm:$0xff]
    %v474 = vld [vmem:[#allocation2 + $0xcf0] sm:$0xff]
    %v475 = vld [vmem:[#allocation2 + $0xcf8] sm:$0xff]
    %v476 = vld [vmem:[#allocation2 + $0xd00] sm:$0xff]
    %v477 = vld [vmem:[#allocation2 + $0xd08] sm:$0xff]
    %v478 = vld [vmem:[#allocation2 + $0xd10] sm:$0xff]
    %v479 = vld [vmem:[#allocation2 + $0xd18] sm:$0xff]
    %v480 = vld [vmem:[#allocation2 + $0xd20] sm:$0xff]
    %v481 = vld [vmem:[#allocation2 + $0xd28] sm:$0xff]
    %v482 = vld [vmem:[#allocation2 + $0xd30] sm:$0xff]
    %v483 = vld [vmem:[#allocation2 + $0xd38] sm:$0xff]
    %v484 = vld [vmem:[#allocation2 + $0xd40] sm:$0xff]
    %v485 = vld [vmem:[#allocation2 + $0xd48] sm:$0xff]
    %v486 = vld [vmem:[#allocation2 + $0xd50] sm:$0xff]
    %v487 = vld [vmem:[#allocation2 + $0xd58] sm:$0xff]
    %v488 = vld [vmem:[#allocation2 + $0xd60] sm:$0xff]
    %v489 = vld [vmem:[#allocation2 + $0xd68] sm:$0xff]
    %v490 = vld [vmem:[#allocation2 + $0xd70] sm:$0xff]
    %v491 = vld [vmem:[#allocation2 + $0xd78] sm:$0xff]
    %v492 = vld [vmem:[#allocation2 + $0xd80] sm:$0xff]
    %v493 = vld [vmem:[#allocation2 + $0xd88] sm:$0xff]
    %v494 = vld [vmem:[#allocation2 + $0xd90] sm:$0xff]
    %v495 = vld [vmem:[#allocation2 + $0xd98] sm:$0xff]
    %v496 = vld [vmem:[#allocation2 + $0xda0] sm:$0xff]
    %v497 = vld [vmem:[#allocation2 + $0xda8] sm:$0xff]
    %v498 = vld [vmem:[#allocation2 + $0xdb0] sm:$0xff]
    %v499 = vld [vmem:[#allocation2 + $0xdb8] sm:$0xff]
    %v500 = vld [vmem:[#allocation2 + $0xdc0] sm:$0xff]
    %v501 = vld [vmem:[#allocation2 + $0xdc8] sm:$0xff]
    %v502 = vld [vmem:[#allocation2 + $0xdd0] sm:$0xff]
    %v503 = vld [vmem:[#allocation2 + $0xdd8] sm:$0xff]
    %v504 = vld [vmem:[#allocation2 + $0xde0] sm:$0xff]
    %v505 = vld [vmem:[#allocation2 + $0xde8] sm:$0xff]
    %v506 = vld [vmem:[#allocation2 + $0xdf0] sm:$0xff]
    %v507 = vld [vmem:[#allocation2 + $0xdf8] sm:$0xff]
    %v508 = vld [vmem:[#allocation2 + $0xe00] sm:$0xff]
    %v509 = vld [vmem:[#allocation2 + $0xe08] sm:$0xff]
    %v510 = vld [vmem:[#allocation2 + $0xe10] sm:$0xff]
    %v511 = vld [vmem:[#allocation2 + $0xe18] sm:$0xff]
    %v512 = vld [vmem:[#allocation2 + $0xe20] sm:$0xff]
    %v513 = vld [vmem:[#allocation2 + $0xe28] sm:$0xff]
    %v514 = vld [vmem:[#allocation2 + $0xe30] sm:$0xff]
    %v515 = vld [vmem:[#allocation2 + $0xe38] sm:$0xff]
    %v516 = vld [vmem:[#allocation2 + $0xe40] sm:$0xff]
    %v517 = vld [vmem:[#allocation2 + $0xe48] sm:$0xff]
    %v518 = vld [vmem:[#allocation2 + $0xe50] sm:$0xff]
    %v519 = vld [vmem:[#allocation2 + $0xe58] sm:$0xff]
    %v520 = vld [vmem:[#allocation2 + $0xe60] sm:$0xff]
    %v521 = vld [vmem:[#allocation2 + $0xe68] sm:$0xff]
    %v522 = vld [vmem:[#allocation2 + $0xe70] sm:$0xff]
    %v523 = vld [vmem:[#allocation2 + $0xe78] sm:$0xff]
    %v524 = vld [vmem:[#allocation2 + $0xe80] sm:$0xff]
    %v525 = vld [vmem:[#allocation2 + $0xe88] sm:$0xff]
    %v526 = vld [vmem:[#allocation2 + $0xe90] sm:$0xff]
    %v527 = vld [vmem:[#allocation2 + $0xe98] sm:$0xff]
    %v528 = vld [vmem:[#allocation2 + $0xea0] sm:$0xff]
    %v529 = vld [vmem:[#allocation2 + $0xea8] sm:$0xff]
    %v530 = vld [vmem:[#allocation2 + $0xeb0] sm:$0xff]
    %v531 = vld [vmem:[#allocation2 + $0xeb8] sm:$0xff]
    %v532 = vld [vmem:[#allocation2 + $0xec0] sm:$0xff]
    %v533 = vld [vmem:[#allocation2 + $0xec8] sm:$0xff]
    %v534 = vld [vmem:[#allocation2 + $0xed0] sm:$0xff]
    %v535 = vld [vmem:[#allocation2 + $0xed8] sm:$0xff]
    %v536 = vld [vmem:[#allocation2 + $0xee0] sm:$0xff]
    %v537 = vld [vmem:[#allocation2 + $0xee8] sm:$0xff]
    %v538 = vld [vmem:[#allocation2 + $0xef0] sm:$0xff]
    %v539 = vld [vmem:[#allocation2 + $0xef8] sm:$0xff]
    %v540 = vld [vmem:[#allocation2 + $0xf00] sm:$0xff]
    %v541 = vld [vmem:[#allocation2 + $0xf08] sm:$0xff]
    %v542 = vld [vmem:[#allocation2 + $0xf10] sm:$0xff]
    %v543 = vld [vmem:[#allocation2 + $0xf18] sm:$0xff]
    %v544 = vld [vmem:[#allocation2 + $0xf20] sm:$0xff]
    %v545 = vld [vmem:[#allocation2 + $0xf28] sm:$0xff]
    %v546 = vld [vmem:[#allocation2 + $0xf30] sm:$0xff]
    %v547 = vld [vmem:[#allocation2 + $0xf38] sm:$0xff]
    %v548 = vld [vmem:[#allocation2 + $0xf40] sm:$0xff]
    %v549 = vld [vmem:[#allocation2 + $0xf48] sm:$0xff]
    %v550 = vld [vmem:[#allocation2 + $0xf50] sm:$0xff]
    %v551 = vld [vmem:[#allocation2 + $0xf58] sm:$0xff]
    %v552 = vld [vmem:[#allocation2 + $0xf60] sm:$0xff]
    %v553 = vld [vmem:[#allocation2 + $0xf68] sm:$0xff]
    %v554 = vld [vmem:[#allocation2 + $0xf70] sm:$0xff]
    %v555 = vld [vmem:[#allocation2 + $0xf78] sm:$0xff]
    %v556 = vld [vmem:[#allocation2 + $0xf80] sm:$0xff]
    %v557 = vld [vmem:[#allocation2 + $0xf88] sm:$0xff]
    %v558 = vld [vmem:[#allocation2 + $0xf90] sm:$0xff]
    %v559 = vld [vmem:[#allocation2 + $0xf98] sm:$0xff]
    %v560 = vld [vmem:[#allocation2 + $0xfa0] sm:$0xff]
    %v561 = vld [vmem:[#allocation2 + $0xfa8] sm:$0xff]
    %v562 = vld [vmem:[#allocation2 + $0xfb0] sm:$0xff]
    %v563 = vld [vmem:[#allocation2 + $0xfb8] sm:$0xff]
    %v564 = vld [vmem:[#allocation2 + $0xfc0] sm:$0xff]
    %v565 = vld [vmem:[#allocation2 + $0xfc8] sm:$0xff]
    %v566 = vld [vmem:[#allocation2 + $0xfd0] sm:$0xff]
    %v567 = vld [vmem:[#allocation2 + $0xfd8] sm:$0xff]
    %v568 = vld [vmem:[#allocation2 + $0xfe0] sm:$0xff]
    %v569 = vld [vmem:[#allocation2 + $0xfe8] sm:$0xff]
    %v570 = vld [vmem:[#allocation2 + $0xff0] sm:$0xff]
    %v571 = vld [vmem:[#allocation2 + $0xff8] sm:$0xff]
    %v572 = vld [vmem:[#allocation4] sm:$0x3]
    %v574 = vperm.slane %v572, 0
    %v575 = vperm.slane %v572, 1
    %578 = vmatpush.msra.mxu0 %v90
    %579 = vmatpush.msra.mxu0 %v88
    %580 = vmatpush.msra.mxu0 %v86
    %581 = vmatpush.msra.mxu0 %v84
    %582 = vmatpush.msra.mxu0 %v82
    %583 = vmatpush.msra.mxu0 %v80
    %584 = vmatpush.msra.mxu0 %v78
    %585 = vmatpush.msra.mxu0 %v76
    %586 = vmatpush.msra.mxu0 %v74
    %587 = vmatpush.msra.mxu0 %v72
    %588 = vmatpush.msra.mxu0 %v70
    %589 = vmatpush.msra.mxu0 %v68
    %590 = vmatpush.msra.mxu0 %v66
    %591 = vmatpush.msra.mxu0 %v64
    %592 = vmatpush.msra.mxu0 %v62
    %593 = vmatpush.msra.mxu0 %v60
    %594 = vmatmul.f32.gmra.mxu0 %v44
    %v595 = vpop.f32.mrf.mxu0
    %v596 = vadd.f32 %v574, %v595
    %597 = vdwg.mxu0
    %598 = vmatpush.msra.mxu0 %v122
    %599 = vmatpush.msra.mxu0 %v120
    %600 = vmatpush.msra.mxu0 %v118
    %601 = vmatpush.msra.mxu0 %v116
    %602 = vmatpush.msra.mxu0 %v114
    %603 = vmatpush.msra.mxu0 %v112
    %604 = vmatpush.msra.mxu0 %v110
    %605 = vmatpush.msra.mxu0 %v108
    %606 = vmatpush.msra.mxu0 %v106
    %607 = vmatpush.msra.mxu0 %v104
    %608 = vmatpush.msra.mxu0 %v102
    %609 = vmatpush.msra.mxu0 %v100
    %610 = vmatpush.msra.mxu0 %v98
    %611 = vmatpush.msra.mxu0 %v96
    %612 = vmatpush.msra.mxu0 %v94
    %613 = vmatpush.msra.mxu0 %v92
    %614 = vmatmul.f32.gmra.mxu0 %v45
    %v615 = vpop.f32.mrf.mxu0
    %v616 = vadd.f32 %v596, %v615
    %617 = vdwg.mxu0
    %618 = vmatpush.msra.mxu0 %v154
    %619 = vmatpush.msra.mxu0 %v152
    %620 = vmatpush.msra.mxu0 %v150
    %621 = vmatpush.msra.mxu0 %v148
    %622 = vmatpush.msra.mxu0 %v146
    %623 = vmatpush.msra.mxu0 %v144
    %624 = vmatpush.msra.mxu0 %v142
    %625 = vmatpush.msra.mxu0 %v140
    %626 = vmatpush.msra.mxu0 %v138
    %627 = vmatpush.msra.mxu0 %v136
    %628 = vmatpush.msra.mxu0 %v134
    %629 = vmatpush.msra.mxu0 %v132
    %630 = vmatpush.msra.mxu0 %v130
    %631 = vmatpush.msra.mxu0 %v128
    %632 = vmatpush.msra.mxu0 %v126
    %633 = vmatpush.msra.mxu0 %v124
    %634 = vmatmul.f32.gmra.mxu0 %v46
    %v635 = vpop.f32.mrf.mxu0
    %v636 = vadd.f32 %v616, %v635
    %637 = vdwg.mxu0
    %638 = vmatpush.msra.mxu0 %v186
    %639 = vmatpush.msra.mxu0 %v184
    %640 = vmatpush.msra.mxu0 %v182
    %641 = vmatpush.msra.mxu0 %v180
    %642 = vmatpush.msra.mxu0 %v178
    %643 = vmatpush.msra.mxu0 %v176
    %644 = vmatpush.msra.mxu0 %v174
    %645 = vmatpush.msra.mxu0 %v172
    %646 = vmatpush.msra.mxu0 %v170
    %647 = vmatpush.msra.mxu0 %v168
    %648 = vmatpush.msra.mxu0 %v166
    %649 = vmatpush.msra.mxu0 %v164
    %650 = vmatpush.msra.mxu0 %v162
    %651 = vmatpush.msra.mxu0 %v160
    %652 = vmatpush.msra.mxu0 %v158
    %653 = vmatpush.msra.mxu0 %v156
    %654 = vmatmul.f32.gmra.mxu0 %v47
    %v655 = vpop.f32.mrf.mxu0
    %v656 = vadd.f32 %v636, %v655
    %657 = vdwg.mxu0
    %658 = vmatpush.msra.mxu0 %v218
    %659 = vmatpush.msra.mxu0 %v216
    %660 = vmatpush.msra.mxu0 %v214
    %661 = vmatpush.msra.mxu0 %v212
    %662 = vmatpush.msra.mxu0 %v210
    %663 = vmatpush.msra.mxu0 %v208
    %664 = vmatpush.msra.mxu0 %v206
    %665 = vmatpush.msra.mxu0 %v204
    %666 = vmatpush.msra.mxu0 %v202
    %667 = vmatpush.msra.mxu0 %v200
    %668 = vmatpush.msra.mxu0 %v198
    %669 = vmatpush.msra.mxu0 %v196
    %670 = vmatpush.msra.mxu0 %v194
    %671 = vmatpush.msra.mxu0 %v192
    %672 = vmatpush.msra.mxu0 %v190
    %673 = vmatpush.msra.mxu0 %v188
    %674 = vmatmul.f32.gmra.mxu0 %v48
    %v675 = vpop.f32.mrf.mxu0
    %v676 = vadd.f32 %v656, %v675
    %677 = vdwg.mxu0
    %678 = vmatpush.msra.mxu0 %v250
    %679 = vmatpush.msra.mxu0 %v248
    %680 = vmatpush.msra.mxu0 %v246
    %681 = vmatpush.msra.mxu0 %v244
    %682 = vmatpush.msra.mxu0 %v242
    %683 = vmatpush.msra.mxu0 %v240
    %684 = vmatpush.msra.mxu0 %v238
    %685 = vmatpush.msra.mxu0 %v236
    %686 = vmatpush.msra.mxu0 %v234
    %687 = vmatpush.msra.mxu0 %v232
    %688 = vmatpush.msra.mxu0 %v230
    %689 = vmatpush.msra.mxu0 %v228
    %690 = vmatpush.msra.mxu0 %v226
    %691 = vmatpush.msra.mxu0 %v224
    %692 = vmatpush.msra.mxu0 %v222
    %693 = vmatpush.msra.mxu0 %v220
    %694 = vmatmul.f32.gmra.mxu0 %v49
    %v695 = vpop.f32.mrf.mxu0
    %v696 = vadd.f32 %v676, %v695
    %697 = vdwg.mxu0
    %698 = vmatpush.msra.mxu0 %v282
    %699 = vmatpush.msra.mxu0 %v280
    %700 = vmatpush.msra.mxu0 %v278
    %701 = vmatpush.msra.mxu0 %v276
    %702 = vmatpush.msra.mxu0 %v274
    %703 = vmatpush.msra.mxu0 %v272
    %704 = vmatpush.msra.mxu0 %v270
    %705 = vmatpush.msra.mxu0 %v268
    %706 = vmatpush.msra.mxu0 %v266
    %707 = vmatpush.msra.mxu0 %v264
    %708 = vmatpush.msra.mxu0 %v262
    %709 = vmatpush.msra.mxu0 %v260
    %710 = vmatpush.msra.mxu0 %v258
    %711 = vmatpush.msra.mxu0 %v256
    %712 = vmatpush.msra.mxu0 %v254
    %713 = vmatpush.msra.mxu0 %v252
    %714 = vmatmul.f32.gmra.mxu0 %v50
    %v715 = vpop.f32.mrf.mxu0
    %v716 = vadd.f32 %v696, %v715
    %717 = vdwg.mxu0
    %718 = vmatpush.msra.mxu0 %v314
    %719 = vmatpush.msra.mxu0 %v312
    %720 = vmatpush.msra.mxu0 %v310
    %721 = vmatpush.msra.mxu0 %v308
    %722 = vmatpush.msra.mxu0 %v306
    %723 = vmatpush.msra.mxu0 %v304
    %724 = vmatpush.msra.mxu0 %v302
    %725 = vmatpush.msra.mxu0 %v300
    %726 = vmatpush.msra.mxu0 %v298
    %727 = vmatpush.msra.mxu0 %v296
    %728 = vmatpush.msra.mxu0 %v294
    %729 = vmatpush.msra.mxu0 %v292
    %730 = vmatpush.msra.mxu0 %v290
    %731 = vmatpush.msra.mxu0 %v288
    %732 = vmatpush.msra.mxu0 %v286
    %733 = vmatpush.msra.mxu0 %v284
    %734 = vmatmul.f32.gmra.mxu0 %v51
    %v735 = vpop.f32.mrf.mxu0
    %v736 = vadd.f32 %v716, %v735
    %737 = vdwg.mxu0
    %738 = vmatpush.msra.mxu0 %v346
    %739 = vmatpush.msra.mxu0 %v344
    %740 = vmatpush.msra.mxu0 %v342
    %741 = vmatpush.msra.mxu0 %v340
    %742 = vmatpush.msra.mxu0 %v338
    %743 = vmatpush.msra.mxu0 %v336
    %744 = vmatpush.msra.mxu0 %v334
    %745 = vmatpush.msra.mxu0 %v332
    %746 = vmatpush.msra.mxu0 %v330
    %747 = vmatpush.msra.mxu0 %v328
    %748 = vmatpush.msra.mxu0 %v326
    %749 = vmatpush.msra.mxu0 %v324
    %750 = vmatpush.msra.mxu0 %v322
    %751 = vmatpush.msra.mxu0 %v320
    %752 = vmatpush.msra.mxu0 %v318
    %753 = vmatpush.msra.mxu0 %v316
    %754 = vmatmul.f32.gmra.mxu0 %v52
    %v755 = vpop.f32.mrf.mxu0
    %v756 = vadd.f32 %v736, %v755
    %757 = vdwg.mxu0
    %758 = vmatpush.msra.mxu0 %v378
    %759 = vmatpush.msra.mxu0 %v376
    %760 = vmatpush.msra.mxu0 %v374
    %761 = vmatpush.msra.mxu0 %v372
    %762 = vmatpush.msra.mxu0 %v370
    %763 = vmatpush.msra.mxu0 %v368
    %764 = vmatpush.msra.mxu0 %v366
    %765 = vmatpush.msra.mxu0 %v364
    %766 = vmatpush.msra.mxu0 %v362
    %767 = vmatpush.msra.mxu0 %v360
    %768 = vmatpush.msra.mxu0 %v358
    %769 = vmatpush.msra.mxu0 %v356
    %770 = vmatpush.msra.mxu0 %v354
    %771 = vmatpush.msra.mxu0 %v352
    %772 = vmatpush.msra.mxu0 %v350
    %773 = vmatpush.msra.mxu0 %v348
    %774 = vmatmul.f32.gmra.mxu0 %v53
    %v775 = vpop.f32.mrf.mxu0
    %v776 = vadd.f32 %v756, %v775
    %777 = vdwg.mxu0
    %778 = vmatpush.msra.mxu0 %v410
    %779 = vmatpush.msra.mxu0 %v408
    %780 = vmatpush.msra.mxu0 %v406
    %781 = vmatpush.msra.mxu0 %v404
    %782 = vmatpush.msra.mxu0 %v402
    %783 = vmatpush.msra.mxu0 %v400
    %784 = vmatpush.msra.mxu0 %v398
    %785 = vmatpush.msra.mxu0 %v396
    %786 = vmatpush.msra.mxu0 %v394
    %787 = vmatpush.msra.mxu0 %v392
    %788 = vmatpush.msra.mxu0 %v390
    %789 = vmatpush.msra.mxu0 %v388
    %790 = vmatpush.msra.mxu0 %v386
    %791 = vmatpush.msra.mxu0 %v384
    %792 = vmatpush.msra.mxu0 %v382
    %793 = vmatpush.msra.mxu0 %v380
    %794 = vmatmul.f32.gmra.mxu0 %v54
    %v795 = vpop.f32.mrf.mxu0
    %v796 = vadd.f32 %v776, %v795
    %797 = vdwg.mxu0
    %798 = vmatpush.msra.mxu0 %v442
    %799 = vmatpush.msra.mxu0 %v440
    %800 = vmatpush.msra.mxu0 %v438
    %801 = vmatpush.msra.mxu0 %v436
    %802 = vmatpush.msra.mxu0 %v434
    %803 = vmatpush.msra.mxu0 %v432
    %804 = vmatpush.msra.mxu0 %v430
    %805 = vmatpush.msra.mxu0 %v428
    %806 = vmatpush.msra.mxu0 %v426
    %807 = vmatpush.msra.mxu0 %v424
    %808 = vmatpush.msra.mxu0 %v422
    %809 = vmatpush.msra.mxu0 %v420
    %810 = vmatpush.msra.mxu0 %v418
    %811 = vmatpush.msra.mxu0 %v416
    %812 = vmatpush.msra.mxu0 %v414
    %813 = vmatpush.msra.mxu0 %v412
    %814 = vmatmul.f32.gmra.mxu0 %v55
    %v815 = vpop.f32.mrf.mxu0
    %v816 = vadd.f32 %v796, %v815
    %817 = vdwg.mxu0
    %818 = vmatpush.msra.mxu0 %v474
    %819 = vmatpush.msra.mxu0 %v472
    %820 = vmatpush.msra.mxu0 %v470
    %821 = vmatpush.msra.mxu0 %v468
    %822 = vmatpush.msra.mxu0 %v466
    %823 = vmatpush.msra.mxu0 %v464
    %824 = vmatpush.msra.mxu0 %v462
    %825 = vmatpush.msra.mxu0 %v460
    %826 = vmatpush.msra.mxu0 %v458
    %827 = vmatpush.msra.mxu0 %v456
    %828 = vmatpush.msra.mxu0 %v454
    %829 = vmatpush.msra.mxu0 %v452
    %830 = vmatpush.msra.mxu0 %v450
    %831 = vmatpush.msra.mxu0 %v448
    %832 = vmatpush.msra.mxu0 %v446
    %833 = vmatpush.msra.mxu0 %v444
    %834 = vmatmul.f32.gmra.mxu0 %v56
    %v835 = vpop.f32.mrf.mxu0
    %v836 = vadd.f32 %v816, %v835
    %837 = vdwg.mxu0
    %838 = vmatpush.msra.mxu0 %v506
    %839 = vmatpush.msra.mxu0 %v504
    %840 = vmatpush.msra.mxu0 %v502
    %841 = vmatpush.msra.mxu0 %v500
    %842 = vmatpush.msra.mxu0 %v498
    %843 = vmatpush.msra.mxu0 %v496
    %844 = vmatpush.msra.mxu0 %v494
    %845 = vmatpush.msra.mxu0 %v492
    %846 = vmatpush.msra.mxu0 %v490
    %847 = vmatpush.msra.mxu0 %v488
    %848 = vmatpush.msra.mxu0 %v486
    %849 = vmatpush.msra.mxu0 %v484
    %850 = vmatpush.msra.mxu0 %v482
    %851 = vmatpush.msra.mxu0 %v480
    %852 = vmatpush.msra.mxu0 %v478
    %853 = vmatpush.msra.mxu0 %v476
    %854 = vmatmul.f32.gmra.mxu0 %v57
    %v855 = vpop.f32.mrf.mxu0
    %v856 = vadd.f32 %v836, %v855
    %857 = vdwg.mxu0
    %858 = vmatpush.msra.mxu0 %v538
    %859 = vmatpush.msra.mxu0 %v536
    %860 = vmatpush.msra.mxu0 %v534
    %861 = vmatpush.msra.mxu0 %v532
    %862 = vmatpush.msra.mxu0 %v530
    %863 = vmatpush.msra.mxu0 %v528
    %864 = vmatpush.msra.mxu0 %v526
    %865 = vmatpush.msra.mxu0 %v524
    %866 = vmatpush.msra.mxu0 %v522
    %867 = vmatpush.msra.mxu0 %v520
    %868 = vmatpush.msra.mxu0 %v518
    %869 = vmatpush.msra.mxu0 %v516
    %870 = vmatpush.msra.mxu0 %v514
    %871 = vmatpush.msra.mxu0 %v512
    %872 = vmatpush.msra.mxu0 %v510
    %873 = vmatpush.msra.mxu0 %v508
    %874 = vmatmul.f32.gmra.mxu0 %v58
    %v875 = vpop.f32.mrf.mxu0
    %v876 = vadd.f32 %v856, %v875
    %877 = vdwg.mxu0
    %878 = vmatpush.msra.mxu0 %v570
    %879 = vmatpush.msra.mxu0 %v568
    %880 = vmatpush.msra.mxu0 %v566
    %881 = vmatpush.msra.mxu0 %v564
    %882 = vmatpush.msra.mxu0 %v562
    %883 = vmatpush.msra.mxu0 %v560
    %884 = vmatpush.msra.mxu0 %v558
    %885 = vmatpush.msra.mxu0 %v556
    %886 = vmatpush.msra.mxu0 %v554
    %887 = vmatpush.msra.mxu0 %v552
    %888 = vmatpush.msra.mxu0 %v550
    %889 = vmatpush.msra.mxu0 %v548
    %890 = vmatpush.msra.mxu0 %v546
    %891 = vmatpush.msra.mxu0 %v544
    %892 = vmatpush.msra.mxu0 %v542
    %893 = vmatpush.msra.mxu0 %v540
    %894 = vmatmul.f32.gmra.mxu0 %v59
    %v895 = vpop.f32.mrf.mxu0
    %v896 = vadd.f32 %v876, %v895
    %897 = vdwg.mxu0
    %898 = vmatpush.msra.mxu0 %v91
    %899 = vmatpush.msra.mxu0 %v89
    %900 = vmatpush.msra.mxu0 %v87
    %901 = vmatpush.msra.mxu0 %v85
    %902 = vmatpush.msra.mxu0 %v83
    %903 = vmatpush.msra.mxu0 %v81
    %904 = vmatpush.msra.mxu0 %v79
    %905 = vmatpush.msra.mxu0 %v77
    %906 = vmatpush.msra.mxu0 %v75
    %907 = vmatpush.msra.mxu0 %v73
    %908 = vmatpush.msra.mxu0 %v71
    %909 = vmatpush.msra.mxu0 %v69
    %910 = vmatpush.msra.mxu0 %v67
    %911 = vmatpush.msra.mxu0 %v65
    %912 = vmatpush.msra.mxu0 %v63
    %913 = vmatpush.msra.mxu0 %v61
    %914 = vmatmul.f32.gmra.mxu0 %v44
    %v915 = vpop.f32.mrf.mxu0
    %v916 = vadd.f32 %v575, %v915
    %917 = vdwg.mxu0
    %918 = vmatpush.msra.mxu0 %v123
    %919 = vmatpush.msra.mxu0 %v121
    %920 = vmatpush.msra.mxu0 %v119
    %921 = vmatpush.msra.mxu0 %v117
    %922 = vmatpush.msra.mxu0 %v115
    %923 = vmatpush.msra.mxu0 %v113
    %924 = vmatpush.msra.mxu0 %v111
    %925 = vmatpush.msra.mxu0 %v109
    %926 = vmatpush.msra.mxu0 %v107
    %927 = vmatpush.msra.mxu0 %v105
    %928 = vmatpush.msra.mxu0 %v103
    %929 = vmatpush.msra.mxu0 %v101
    %930 = vmatpush.msra.mxu0 %v99
    %931 = vmatpush.msra.mxu0 %v97
    %932 = vmatpush.msra.mxu0 %v95
    %933 = vmatpush.msra.mxu0 %v93
    %934 = vmatmul.f32.gmra.mxu0 %v45
    %v935 = vpop.f32.mrf.mxu0
    %v936 = vadd.f32 %v916, %v935
    %937 = vdwg.mxu0
    %938 = vmatpush.msra.mxu0 %v155
    %939 = vmatpush.msra.mxu0 %v153
    %940 = vmatpush.msra.mxu0 %v151
    %941 = vmatpush.msra.mxu0 %v149
    %942 = vmatpush.msra.mxu0 %v147
    %943 = vmatpush.msra.mxu0 %v145
    %944 = vmatpush.msra.mxu0 %v143
    %945 = vmatpush.msra.mxu0 %v141
    %946 = vmatpush.msra.mxu0 %v139
    %947 = vmatpush.msra.mxu0 %v137
    %948 = vmatpush.msra.mxu0 %v135
    %949 = vmatpush.msra.mxu0 %v133
    %950 = vmatpush.msra.mxu0 %v131
    %951 = vmatpush.msra.mxu0 %v129
    %952 = vmatpush.msra.mxu0 %v127
    %953 = vmatpush.msra.mxu0 %v125
    %954 = vmatmul.f32.gmra.mxu0 %v46
    %v955 = vpop.f32.mrf.mxu0
    %v956 = vadd.f32 %v936, %v955
    %957 = vdwg.mxu0
    %958 = vmatpush.msra.mxu0 %v187
    %959 = vmatpush.msra.mxu0 %v185
    %960 = vmatpush.msra.mxu0 %v183
    %961 = vmatpush.msra.mxu0 %v181
    %962 = vmatpush.msra.mxu0 %v179
    %963 = vmatpush.msra.mxu0 %v177
    %964 = vmatpush.msra.mxu0 %v175
    %965 = vmatpush.msra.mxu0 %v173
    %966 = vmatpush.msra.mxu0 %v171
    %967 = vmatpush.msra.mxu0 %v169
    %968 = vmatpush.msra.mxu0 %v167
    %969 = vmatpush.msra.mxu0 %v165
    %970 = vmatpush.msra.mxu0 %v163
    %971 = vmatpush.msra.mxu0 %v161
    %972 = vmatpush.msra.mxu0 %v159
    %973 = vmatpush.msra.mxu0 %v157
    %974 = vmatmul.f32.gmra.mxu0 %v47
    %v975 = vpop.f32.mrf.mxu0
    %v976 = vadd.f32 %v956, %v975
    %977 = vdwg.mxu0
    %978 = vmatpush.msra.mxu0 %v219
    %979 = vmatpush.msra.mxu0 %v217
    %980 = vmatpush.msra.mxu0 %v215
    %981 = vmatpush.msra.mxu0 %v213
    %982 = vmatpush.msra.mxu0 %v211
    %983 = vmatpush.msra.mxu0 %v209
    %984 = vmatpush.msra.mxu0 %v207
    %985 = vmatpush.msra.mxu0 %v205
    %986 = vmatpush.msra.mxu0 %v203
    %987 = vmatpush.msra.mxu0 %v201
    %988 = vmatpush.msra.mxu0 %v199
    %989 = vmatpush.msra.mxu0 %v197
    %990 = vmatpush.msra.mxu0 %v195
    %991 = vmatpush.msra.mxu0 %v193
    %992 = vmatpush.msra.mxu0 %v191
    %993 = vmatpush.msra.mxu0 %v189
    %994 = vmatmul.f32.gmra.mxu0 %v48
    %v995 = vpop.f32.mrf.mxu0
    %v996 = vadd.f32 %v976, %v995
    %997 = vdwg.mxu0
    %998 = vmatpush.msra.mxu0 %v251
    %999 = vmatpush.msra.mxu0 %v249
    %1000 = vmatpush.msra.mxu0 %v247
    %1001 = vmatpush.msra.mxu0 %v245
    %1002 = vmatpush.msra.mxu0 %v243
    %1003 = vmatpush.msra.mxu0 %v241
    %1004 = vmatpush.msra.mxu0 %v239
    %1005 = vmatpush.msra.mxu0 %v237
    %1006 = vmatpush.msra.mxu0 %v235
    %1007 = vmatpush.msra.mxu0 %v233
    %1008 = vmatpush.msra.mxu0 %v231
    %1009 = vmatpush.msra.mxu0 %v229
    %1010 = vmatpush.msra.mxu0 %v227
    %1011 = vmatpush.msra.mxu0 %v225
    %1012 = vmatpush.msra.mxu0 %v223
    %1013 = vmatpush.msra.mxu0 %v221
    %1014 = vmatmul.f32.gmra.mxu0 %v49
    %v1015 = vpop.f32.mrf.mxu0
    %v1016 = vadd.f32 %v996, %v1015
    %1017 = vdwg.mxu0
    %1018 = vmatpush.msra.mxu0 %v283
    %1019 = vmatpush.msra.mxu0 %v281
    %1020 = vmatpush.msra.mxu0 %v279
    %1021 = vmatpush.msra.mxu0 %v277
    %1022 = vmatpush.msra.mxu0 %v275
    %1023 = vmatpush.msra.mxu0 %v273
    %1024 = vmatpush.msra.mxu0 %v271
    %1025 = vmatpush.msra.mxu0 %v269
    %1026 = vmatpush.msra.mxu0 %v267
    %1027 = vmatpush.msra.mxu0 %v265
    %1028 = vmatpush.msra.mxu0 %v263
    %1029 = vmatpush.msra.mxu0 %v261
    %1030 = vmatpush.msra.mxu0 %v259
    %1031 = vmatpush.msra.mxu0 %v257
    %1032 = vmatpush.msra.mxu0 %v255
    %1033 = vmatpush.msra.mxu0 %v253
    %1034 = vmatmul.f32.gmra.mxu0 %v50
    %v1035 = vpop.f32.mrf.mxu0
    %v1036 = vadd.f32 %v1016, %v1035
    %1037 = vdwg.mxu0
    %1038 = vmatpush.msra.mxu0 %v315
    %1039 = vmatpush.msra.mxu0 %v313
    %1040 = vmatpush.msra.mxu0 %v311
    %1041 = vmatpush.msra.mxu0 %v309
    %1042 = vmatpush.msra.mxu0 %v307
    %1043 = vmatpush.msra.mxu0 %v305
    %1044 = vmatpush.msra.mxu0 %v303
    %1045 = vmatpush.msra.mxu0 %v301
    %1046 = vmatpush.msra.mxu0 %v299
    %1047 = vmatpush.msra.mxu0 %v297
    %1048 = vmatpush.msra.mxu0 %v295
    %1049 = vmatpush.msra.mxu0 %v293
    %1050 = vmatpush.msra.mxu0 %v291
    %1051 = vmatpush.msra.mxu0 %v289
    %1052 = vmatpush.msra.mxu0 %v287
    %1053 = vmatpush.msra.mxu0 %v285
    %1054 = vmatmul.f32.gmra.mxu0 %v51
    %v1055 = vpop.f32.mrf.mxu0
    %v1056 = vadd.f32 %v1036, %v1055
    %1057 = vdwg.mxu0
    %1058 = vmatpush.msra.mxu0 %v347
    %1059 = vmatpush.msra.mxu0 %v345
    %1060 = vmatpush.msra.mxu0 %v343
    %1061 = vmatpush.msra.mxu0 %v341
    %1062 = vmatpush.msra.mxu0 %v339
    %1063 = vmatpush.msra.mxu0 %v337
    %1064 = vmatpush.msra.mxu0 %v335
    %1065 = vmatpush.msra.mxu0 %v333
    %1066 = vmatpush.msra.mxu0 %v331
    %1067 = vmatpush.msra.mxu0 %v329
    %1068 = vmatpush.msra.mxu0 %v327
    %1069 = vmatpush.msra.mxu0 %v325
    %1070 = vmatpush.msra.mxu0 %v323
    %1071 = vmatpush.msra.mxu0 %v321
    %1072 = vmatpush.msra.mxu0 %v319
    %1073 = vmatpush.msra.mxu0 %v317
    %1074 = vmatmul.f32.gmra.mxu0 %v52
    %v1075 = vpop.f32.mrf.mxu0
    %v1076 = vadd.f32 %v1056, %v1075
    %1077 = vdwg.mxu0
    %1078 = vmatpush.msra.mxu0 %v379
    %1079 = vmatpush.msra.mxu0 %v377
    %1080 = vmatpush.msra.mxu0 %v375
    %1081 = vmatpush.msra.mxu0 %v373
    %1082 = vmatpush.msra.mxu0 %v371
    %1083 = vmatpush.msra.mxu0 %v369
    %1084 = vmatpush.msra.mxu0 %v367
    %1085 = vmatpush.msra.mxu0 %v365
    %1086 = vmatpush.msra.mxu0 %v363
    %1087 = vmatpush.msra.mxu0 %v361
    %1088 = vmatpush.msra.mxu0 %v359
    %1089 = vmatpush.msra.mxu0 %v357
    %1090 = vmatpush.msra.mxu0 %v355
    %1091 = vmatpush.msra.mxu0 %v353
    %1092 = vmatpush.msra.mxu0 %v351
    %1093 = vmatpush.msra.mxu0 %v349
    %1094 = vmatmul.f32.gmra.mxu0 %v53
    %v1095 = vpop.f32.mrf.mxu0
    %v1096 = vadd.f32 %v1076, %v1095
    %1097 = vdwg.mxu0
    %1098 = vmatpush.msra.mxu0 %v411
    %1099 = vmatpush.msra.mxu0 %v409
    %1100 = vmatpush.msra.mxu0 %v407
    %1101 = vmatpush.msra.mxu0 %v405
    %1102 = vmatpush.msra.mxu0 %v403
    %1103 = vmatpush.msra.mxu0 %v401
    %1104 = vmatpush.msra.mxu0 %v399
    %1105 = vmatpush.msra.mxu0 %v397
    %1106 = vmatpush.msra.mxu0 %v395
    %1107 = vmatpush.msra.mxu0 %v393
    %1108 = vmatpush.msra.mxu0 %v391
    %1109 = vmatpush.msra.mxu0 %v389
    %1110 = vmatpush.msra.mxu0 %v387
    %1111 = vmatpush.msra.mxu0 %v385
    %1112 = vmatpush.msra.mxu0 %v383
    %1113 = vmatpush.msra.mxu0 %v381
    %1114 = vmatmul.f32.gmra.mxu0 %v54
    %v1115 = vpop.f32.mrf.mxu0
    %v1116 = vadd.f32 %v1096, %v1115
    %1117 = vdwg.mxu0
    %1118 = vmatpush.msra.mxu0 %v443
    %1119 = vmatpush.msra.mxu0 %v441
    %1120 = vmatpush.msra.mxu0 %v439
    %1121 = vmatpush.msra.mxu0 %v437
    %1122 = vmatpush.msra.mxu0 %v435
    %1123 = vmatpush.msra.mxu0 %v433
    %1124 = vmatpush.msra.mxu0 %v431
    %1125 = vmatpush.msra.mxu0 %v429
    %1126 = vmatpush.msra.mxu0 %v427
    %1127 = vmatpush.msra.mxu0 %v425
    %1128 = vmatpush.msra.mxu0 %v423
    %1129 = vmatpush.msra.mxu0 %v421
    %1130 = vmatpush.msra.mxu0 %v419
    %1131 = vmatpush.msra.mxu0 %v417
    %1132 = vmatpush.msra.mxu0 %v415
    %1133 = vmatpush.msra.mxu0 %v413
    %1134 = vmatmul.f32.gmra.mxu0 %v55
    %v1135 = vpop.f32.mrf.mxu0
    %v1136 = vadd.f32 %v1116, %v1135
    %1137 = vdwg.mxu0
    %1138 = vmatpush.msra.mxu0 %v475
    %1139 = vmatpush.msra.mxu0 %v473
    %1140 = vmatpush.msra.mxu0 %v471
    %1141 = vmatpush.msra.mxu0 %v469
    %1142 = vmatpush.msra.mxu0 %v467
    %1143 = vmatpush.msra.mxu0 %v465
    %1144 = vmatpush.msra.mxu0 %v463
    %1145 = vmatpush.msra.mxu0 %v461
    %1146 = vmatpush.msra.mxu0 %v459
    %1147 = vmatpush.msra.mxu0 %v457
    %1148 = vmatpush.msra.mxu0 %v455
    %1149 = vmatpush.msra.mxu0 %v453
    %1150 = vmatpush.msra.mxu0 %v451
    %1151 = vmatpush.msra.mxu0 %v449
    %1152 = vmatpush.msra.mxu0 %v447
    %1153 = vmatpush.msra.mxu0 %v445
    %1154 = vmatmul.f32.gmra.mxu0 %v56
    %v1155 = vpop.f32.mrf.mxu0
    %v1156 = vadd.f32 %v1136, %v1155
    %1157 = vdwg.mxu0
    %1158 = vmatpush.msra.mxu0 %v507
    %1159 = vmatpush.msra.mxu0 %v505
    %1160 = vmatpush.msra.mxu0 %v503
    %1161 = vmatpush.msra.mxu0 %v501
    %1162 = vmatpush.msra.mxu0 %v499
    %1163 = vmatpush.msra.mxu0 %v497
    %1164 = vmatpush.msra.mxu0 %v495
    %1165 = vmatpush.msra.mxu0 %v493
    %1166 = vmatpush.msra.mxu0 %v491
    %1167 = vmatpush.msra.mxu0 %v489
    %1168 = vmatpush.msra.mxu0 %v487
    %1169 = vmatpush.msra.mxu0 %v485
    %1170 = vmatpush.msra.mxu0 %v483
    %1171 = vmatpush.msra.mxu0 %v481
    %1172 = vmatpush.msra.mxu0 %v479
    %1173 = vmatpush.msra.mxu0 %v477
    %1174 = vmatmul.f32.gmra.mxu0 %v57
    %v1175 = vpop.f32.mrf.mxu0
    %v1176 = vadd.f32 %v1156, %v1175
    %1177 = vdwg.mxu0
    %1178 = vmatpush.msra.mxu0 %v539
    %1179 = vmatpush.msra.mxu0 %v537
    %1180 = vmatpush.msra.mxu0 %v535
    %1181 = vmatpush.msra.mxu0 %v533
    %1182 = vmatpush.msra.mxu0 %v531
    %1183 = vmatpush.msra.mxu0 %v529
    %1184 = vmatpush.msra.mxu0 %v527
    %1185 = vmatpush.msra.mxu0 %v525
    %1186 = vmatpush.msra.mxu0 %v523
    %1187 = vmatpush.msra.mxu0 %v521
    %1188 = vmatpush.msra.mxu0 %v519
    %1189 = vmatpush.msra.mxu0 %v517
    %1190 = vmatpush.msra.mxu0 %v515
    %1191 = vmatpush.msra.mxu0 %v513
    %1192 = vmatpush.msra.mxu0 %v511
    %1193 = vmatpush.msra.mxu0 %v509
    %1194 = vmatmul.f32.gmra.mxu0 %v58
    %v1195 = vpop.f32.mrf.mxu0
    %v1196 = vadd.f32 %v1176, %v1195
    %1197 = vdwg.mxu0
    %1198 = vmatpush.msra.mxu0 %v571
    %1199 = vmatpush.msra.mxu0 %v569
    %1200 = vmatpush.msra.mxu0 %v567
    %1201 = vmatpush.msra.mxu0 %v565
    %1202 = vmatpush.msra.mxu0 %v563
    %1203 = vmatpush.msra.mxu0 %v561
    %1204 = vmatpush.msra.mxu0 %v559
    %1205 = vmatpush.msra.mxu0 %v557
    %1206 = vmatpush.msra.mxu0 %v555
    %1207 = vmatpush.msra.mxu0 %v553
    %1208 = vmatpush.msra.mxu0 %v551
    %1209 = vmatpush.msra.mxu0 %v549
    %1210 = vmatpush.msra.mxu0 %v547
    %1211 = vmatpush.msra.mxu0 %v545
    %1212 = vmatpush.msra.mxu0 %v543
    %1213 = vmatpush.msra.mxu0 %v541
    %1214 = vmatmul.f32.gmra.mxu0 %v59
    %v1215 = vpop.f32.mrf.mxu0
    %v1216 = vadd.f32 %v1196, %v1215
    %1217 = vdwg.mxu0
    %v1218 = vmax.f32 %v896, 0.0
    %v1219 = vmax.f32 %v1216, 0.0
    %1220 = vst [vmem:[%s3] sm:$0xff] %v1218
    %1221 = vst [vmem:[%s3 + $0x8] sm:$0xff] %v1219
    // Predicated region
    $region22: #{visual_fc_pallas.1} parent=1 // pred_check
      _
    $region23: #{visual_fc_pallas.1} parent=1 // pred_check_branch
      %1223 = sbr.rel (0) target = $region25
    $region24: #{visual_fc_pallas.1} parent=1 // pred_region
      _
    $region25: #{visual_fc_pallas.1} parent=1 // pred_fallthru
      _
    // Predicated region
    $region26: #{visual_fc_pallas.1} parent=1 // pred_check
      _
    $region27: #{visual_fc_pallas.1} parent=1 // pred_check_branch
      %1225 = sbr.rel (0) target = $region29
    $region28: #{visual_fc_pallas.1} parent=1 // pred_region
      _
    $region29: #{visual_fc_pallas.1} parent=1 // pred_fallthru
      _
    %1226 = vsyncpa [#allocation3], 1
    %1227 = vsyncpa [#allocation5], 1

</llo_original>
